<compile_context>
chip_gen: v7x
topology: tpu7x:2x2x1
jax: 0.10.0
libtpu: 0.0.40
codegen_flags: <defaults>
</compile_context>

<pallas_src>
import jax
import jax.numpy as jnp
from jax.experimental import pallas as pl
from jax.experimental.pallas import tpu as pltpu


def _hbm_copy_kernel(x_ref, o_ref, sem):
    # One HBM -> HBM DMA covering the whole array.  No VMEM staging.
    copy = pltpu.make_async_copy(x_ref, o_ref, sem)
    copy.start()
    copy.wait()


@jax.jit
def _pallas_hbm_copy(x):
    """Fresh copy of `x` via a single HBM->HBM DMA (no VMEM round trip)."""
    nbytes = x.size * jnp.dtype(x.dtype).itemsize
    return pl.pallas_call(
        _hbm_copy_kernel,
        out_shape=jax.ShapeDtypeStruct(x.shape, x.dtype),
        in_specs=[pl.BlockSpec(memory_space=pl.ANY)],
        out_specs=pl.BlockSpec(memory_space=pl.ANY),
        scratch_shapes=[pltpu.SemaphoreType.DMA(())],
        cost_estimate=pl.CostEstimate(
            flops=0, transcendentals=0, bytes_accessed=2 * nbytes
        ),
    )(x)


def _materialize_one(x):
    """Value-identical copy of `x` in a fresh buffer."""
    if not isinstance(x, jax.Array):
        x = jnp.asarray(x)
    if x.size == 0 or x.ndim == 0:
        # Degenerate shapes: a DMA buys nothing; jnp.copy still gives a new buffer.
        return jnp.copy(x)
    return _pallas_hbm_copy(x)


def empty_forward(*args, **kwargs):
    """JAX equivalent of Empty.forward: a true pass-through (zero copies)."""
    if len(args) == 1:
        return args[0]
    elif len(args) == 0:
        return None
    return tuple(args)


def empty_forward_materialized(*args, **kwargs):
    """Empty.forward semantics, but every array is routed through the HBM->HBM
    DMA copy kernel so the result is a fresh buffer (never an alias)."""
    if len(args) == 1:
        return _materialize_one(args[0])
    elif len(args) == 0:
        return None
    return tuple(_materialize_one(a) for a in args)


if __name__ == "__main__":
    key = jax.random.PRNGKey(0)

    # 1-arg case: identity fast path (no kernel, no HBM traffic), NCHW input.
    x = jax.random.normal(key, (2, 4, 16, 16), dtype=jnp.float32)
    y = jax.block_until_ready(empty_forward(x))
    assert y.shape == x.shape and y.dtype == x.dtype
    assert bool(jnp.all(y == x))

    # 0-arg case: None.
    assert empty_forward() is None

    # multi-arg case: tuple passthrough.
    k1, k2, k3, k4 = jax.random.split(key, 4)
    a = jax.random.normal(k1, (8, 32), dtype=jnp.float32)
    b = jax.random.normal(k2, (2, 4, 16, 16), dtype=jnp.bfloat16)
    out = empty_forward(a, b)
    assert isinstance(out, tuple) and len(out) == 2
    assert bool(jnp.all(out[0] == a))
    assert bool(jnp.all(out[1] == b))

    # Materializing path: single HBM->HBM DMA, no alignment constraint.
    # (a) small NCHW tensor
    xc = jax.block_until_ready(empty_forward_materialized(x))
    assert xc.shape == x.shape and xc.dtype == x.dtype
    assert bool(jnp.all(xc == x))

    # (b) non-128-divisible element count (3*5*7 = 105) -- previously aliased.
    odd = jax.random.normal(k3, (3, 5, 7), dtype=jnp.float32)
    odd_copy = jax.block_until_ready(empty_forward_materialized(odd))
    assert odd_copy.shape == odd.shape and odd_copy.dtype == odd.dtype
    assert bool(jnp.all(odd_copy == odd))

    # (c) larger f32 slab + bf16 tensor through the multi-arg path.
    big = jax.random.normal(k4, (512, 1024), dtype=jnp.float32)
    big_copy, b_copy = empty_forward_materialized(big, b)
    big_copy = jax.block_until_ready(big_copy)
    b_copy = jax.block_until_ready(b_copy)
    assert big_copy.shape == big.shape and big_copy.dtype == big.dtype
    assert bool(jnp.all(big_copy == big))
    assert b_copy.dtype == b.dtype and bool(jnp.all(b_copy == b))

    print("KERNEL_OK")
</pallas_src>

<mosaic_0001>
module attributes {stable_mosaic.version = 11 : i64} {
  func.func @_hbm_copy_kernel(%arg0: memref<2x4x16x16xf32, #tpu.memory_space<any>>, %arg1: memref<2x4x16x16xf32, #tpu.memory_space<any>>, %arg2: memref<!tpu.dma_semaphore, #tpu.memory_space<semaphore_mem>>) attributes {dimension_semantics = [], scalar_prefetch = 0 : i64, scratch_operands = 1 : i64, tpu.core_type = #tpu.core_type<tc>} {
    tpu.enqueue_dma source(%arg0 : memref<2x4x16x16xf32, #tpu.memory_space<any>>) target(%arg1 : memref<2x4x16x16xf32, #tpu.memory_space<any>>) target_semaphore(%arg2 : memref<!tpu.dma_semaphore, #tpu.memory_space<semaphore_mem>>)
    tpu.wait_dma2 semaphore(%arg2 : memref<!tpu.dma_semaphore, #tpu.memory_space<semaphore_mem>>) src(%arg0 : memref<2x4x16x16xf32, #tpu.memory_space<any>>) dst(%arg1 : memref<2x4x16x16xf32, #tpu.memory_space<any>>)
    return
  }
}

</mosaic_0001>

<llo_original>
// kernel: _pallas_hbm_copy.1
$region0: #{_pallas_hbm_copy.1}
  #allocation0 [shape = 'u32[]', space=smem, size = 0x4, offset = 0x4, fixed_abs, tag = 'smem constant byte address 0x4 - core index']
  #allocation1 [shape = 'u32[144,128]{1,0:T(1,128)}', space=vmem, size = 0x12000, scoped, tag = 'internal scratch']
  #allocation2 [shape = 's32[1]{0}', space=sflag, size = 0x4, scoped, tag = 'scratch operand']
  #allocation3 [shape = 's32[]', space=sflag, size = 0x4, offset = 0, fixed_abs, tag = 'sflag constant byte address 0x0 - dummy sync flag']
  #allocation4 [shape = 'u32[0]{0}', space=smem, size = 0, offset = 0, fixed_abs, tag = 'smem constant byte address 0x0 - null']
  %s0 = inlined_call_operand.hbm [shape: f32[2,4,16,16], index: 0, kind: input, shape index: {}]
  %s1 = inlined_call_operand.hbm [shape: f32[2,4,16,16], index: 1, kind: output, shape index: {}]
  %s2 = sld [smem:[#allocation0]]
  $region2: #{_pallas_hbm_copy.1} parent=0
    _
  %s4 = ssub.s32 1, %s2
  %s5 = scalar_select 0, %s4, %s2
  %s7 = sshll.u32 1, 14
  %s8 = sxor.u32 4294967295, %s7
  %s11 = sshll.u32 3, 24
  %s12 = sxor.u32 4294967295, %s11
  %s13 = sand.u32 0, %s12
  %s15 = sor.u32 %s13, 0
  %18 = dma.general %s0, 2048, %s1, [#allocation2], [#allocation3], [#allocation4], %s15, 0
  %s19 = smul.u32 2, 4
  %s20 = smul.u32 %s19, 16
  %s21 = smul.u32 %s20, 1
  %s22 = sshll.u32 %s21, 4
  %23 = dma.done [#allocation2], %s22
  %24 = vsyncmov [#allocation2]
  %s25 = vpop.sfrf %24
  %p26 = scmp.eq.s32.totalorder %s25, 0
  %p27 = pneg %p26
  %29 = shalt.err (%p27)

</llo_original>
